<compile_context>
chip_gen: v5e
topology: v5e:2x2
jax: 0.10.0
libtpu: 0.0.40
codegen_flags: <defaults>
</compile_context>

<pallas_src>
import functools

import jax
import jax.numpy as jnp
import numpy as np
from jax.experimental import pallas as pl
from jax.experimental.pallas import tpu as pltpu

_MAX_INFLIGHT_DMAS = 4       # channel chunks started before the first wait
_NARROW_ROW_BYTES = 512      # below this, a crop row is too short for an efficient strided DMA
_ROWS_VMEM_BUDGET = 8 << 20  # max staging bytes for the row-staged fallback


def face_crop_get_params(h: int, w: int, rng: np.random.Generator,
                         th_multiple: int = 1):
    """Host-side replica of FaceCrop.get_params (torch.rand -> host numpy RNG)."""
    if h != w:
        raise ValueError("The input image is not square.")
    ratio = float(rng.random()) * 0.1 + 0.35
    yc = float(rng.random()) * 0.15 + 0.35
    th = int(h / 1.15 * 0.35 / ratio)
    if th_multiple > 1:
        # Optional bucketing (changes the crop size!): keeps the number of
        # distinct compiles small and sublane-aligns the staged rows.
        th = max(th_multiple, (th // th_multiple) * th_multiple)
    th = max(1, min(th, h))          # guard for degenerate tiny inputs
    tw = th
    cx = int(0.5 * w)
    cy = int(0.5 / 1.15 * h)
    i = min(max(int(cy - yc * th), 0), h - th)
    j = int(cx - 0.5 * tw)           # matches the reference exactly (no clamp)
    assert 0 <= j and j + tw <= w, "crop escaped the image bounds"
    return i, j, th, tw


def _partition(total: int, parts: int):
    """Split `total` into `parts` near-equal static (offset, size) chunks."""
    parts = max(1, min(parts, total))
    base, rem = divmod(total, parts)
    chunks, off = [], 0
    for p in range(parts):
        sz = base + (1 if p < rem else 0)
        chunks.append((off, sz))
        off += sz
    return tuple(chunks)


def _crop_direct_kernel(i_ref, img_ref, out_ref, sems, *,
                        nc, csz, chunks, th, tw, j):
    # i_ref  : SMEM int32[1] holding the runtime row offset i (scalar prefetch)
    # img_ref: (nc, H, W) image, left in HBM (memory_space=pl.ANY)
    # out_ref: (nc, th, tw) output, left in HBM (memory_space=pl.ANY)
    # sems   : one DMA semaphore per in-flight channel chunk
    g = pl.program_id(0)
    i = i_ref[0]
    # Channel-group start for this grid step; the clamp lets the last group of
    # an odd split overlap the previous one (it rewrites identical bytes).
    nc0 = jnp.minimum(g * csz, nc - csz)
    copies = []
    for k, (off, sz) in enumerate(chunks):   # static unroll: several DMAs in flight
        c0 = nc0 + off
        cp = pltpu.make_async_copy(
            img_ref.at[pl.ds(c0, sz), pl.ds(i, th), pl.ds(j, tw)],
            out_ref.at[pl.ds(c0, sz), :, :],
            sems.at[k],
        )
        cp.start()
        copies.append(cp)
    for cp in copies:                        # wait only after all are in flight
        cp.wait()


def _crop_rows_kernel(i_ref, img_ref, out_ref, tmp_ref, sem, *, th, tw, j):
    # Narrow-crop path: read full-width rows (one contiguous th*W span per
    # channel) into VMEM, then slice columns on-core at the STATIC offset j.
    i = i_ref[0]
    cp = pltpu.make_async_copy(img_ref.at[:, pl.ds(i, th), :], tmp_ref, sem)
    cp.start()
    cp.wait()
    out_ref[...] = tmp_ref[:, :, j:j + tw]


@functools.lru_cache(maxsize=None)
def _build_direct_call(nc, h, w, th, tw, j, dtype_name):
    dtype = jnp.dtype(dtype_name)
    groups = 2 if nc >= 2 else 1             # >=2 grid steps: v7x splits them over 2 TCs
    csz = -(-nc // groups)                   # ceil; last group start is clamped in-kernel
    chunks = _partition(csz, _MAX_INFLIGHT_DMAS)
    kernel = functools.partial(_crop_direct_kernel, nc=nc, csz=csz,
                               chunks=chunks, th=th, tw=tw, j=j)
    return pl.pallas_call(
        kernel,
        out_shape=jax.ShapeDtypeStruct((nc, th, tw), dtype),
        grid_spec=pltpu.PrefetchScalarGridSpec(
            num_scalar_prefetch=1,
            grid=(groups,),
            in_specs=[pl.BlockSpec(memory_space=pl.ANY)],   # image stays in HBM
            out_specs=pl.BlockSpec(memory_space=pl.ANY),    # output written by DMA only
            scratch_shapes=[pltpu.SemaphoreType.DMA((len(chunks),))],
        ),
        compiler_params=pltpu.CompilerParams(
            dimension_semantics=("parallel",),
        ),
    )


@functools.lru_cache(maxsize=None)
def _build_rows_call(nc, h, w, th, tw, j, dtype_name):
    dtype = jnp.dtype(dtype_name)
    tmp_bytes = nc * th * w * dtype.itemsize
    out_bytes = nc * th * tw * dtype.itemsize
    # Staging + (possibly double-buffered) output block + headroom; capped at
    # 48 MiB so it always leaves headroom inside v7x's 64 MiB physical VMEM.
    vmem_limit = int(min(48 << 20,
                         max(16 << 20, tmp_bytes + 2 * out_bytes + (4 << 20))))
    kernel = functools.partial(_crop_rows_kernel, th=th, tw=tw, j=j)
    return pl.pallas_call(
        kernel,
        out_shape=jax.ShapeDtypeStruct((nc, th, tw), dtype),
        grid_spec=pltpu.PrefetchScalarGridSpec(
            num_scalar_prefetch=1,
            grid=(1,),
            in_specs=[pl.BlockSpec(memory_space=pl.ANY)],
            out_specs=pl.BlockSpec((nc, th, tw), lambda g, i_ref: (0, 0, 0)),
            scratch_shapes=[pltpu.VMEM((nc, th, w), dtype),
                            pltpu.SemaphoreType.DMA],
        ),
        compiler_params=pltpu.CompilerParams(
            dimension_semantics=("arbitrary",),
            vmem_limit_bytes=vmem_limit,
        ),
    )


def face_crop(img: jax.Array, rng: np.random.Generator, *,
              th_multiple: int = 1, force_path=None):
    """FaceCrop.forward: random square crop of an NCHW image batch."""
    n, c, h, w = img.shape
    i, j, th, tw = face_crop_get_params(h, w, rng, th_multiple=th_multiple)
    nc = n * c
    dtype = jnp.dtype(img.dtype)

    narrow = (tw * dtype.itemsize < _NARROW_ROW_BYTES) or (4 * tw >= 3 * w)
    fits = nc * th * w * dtype.itemsize <= _ROWS_VMEM_BUDGET
    use_rows = narrow and fits
    if force_path is not None:
        use_rows = (force_path == "rows")
    # TODO(synk): a narrow crop whose full-row staging exceeds the budget falls
    # back to the direct (descriptor-heavy) path; it could be row-group tiled.

    build = _build_rows_call if use_rows else _build_direct_call
    fn = build(nc, h, w, th, tw, j, dtype.name)
    out = fn(jnp.asarray([i], dtype=jnp.int32), img.reshape(nc, h, w))
    return out.reshape(n, c, th, tw), (i, j, th, tw)


if __name__ == "__main__":
    rng = np.random.default_rng(0)           # host RNG for crop params (no D2H syncs)
    k_img = jax.random.PRNGKey(0)

    N, C, H, W = 2, 3, 16, 16
    img = jax.random.normal(k_img, (N, C, H, W), dtype=jnp.float32)
    img_np = np.asarray(img)

    # 1) Natural dispatch: at this size the crop rows are narrow -> "rows" path.
    out, (i, j, th, tw) = face_crop(img, rng)
    out = jax.block_until_ready(out)
    np.testing.assert_array_equal(np.asarray(out), img_np[:, :, i:i + th, j:j + tw])

    # 2) Force the direct HBM->HBM multi-DMA path on the same params.
    out2, (i2, j2, th2, tw2) = face_crop(img, np.random.default_rng(0),
                                         force_path="direct")
    out2 = jax.block_until_ready(out2)
    np.testing.assert_array_equal(np.asarray(out2),
                                  img_np[:, :, i2:i2 + th2, j2:j2 + tw2])

    # 3) Repeat the natural path: hits the lru_cache'd compile because the row
    #    offset i is a runtime scalar and j is deterministic given th.
    out3, (i3, j3, th3, tw3) = face_crop(img, np.random.default_rng(0))
    out3 = jax.block_until_ready(out3)
    np.testing.assert_array_equal(np.asarray(out3),
                                  img_np[:, :, i3:i3 + th3, j3:j3 + tw3])

    print("KERNEL_OK")
</pallas_src>

<mosaic_0001>
module attributes {stable_mosaic.version = 11 : i64} {
  func.func @_crop_rows_kernel(%arg0: i32, %arg1: memref<1xi32, #tpu.memory_space<smem>>, %arg2: memref<6x16x16xf32, #tpu.memory_space<any>>, %arg3: memref<6x11x11xf32, #tpu.memory_space<vmem>>, %arg4: memref<6x11x16xf32, #tpu.memory_space<vmem>>, %arg5: memref<!tpu.dma_semaphore, #tpu.memory_space<semaphore_mem>>) attributes {dimension_semantics = [#tpu.dimension_semantics<arbitrary>], iteration_bounds = array<i64: 1>, scalar_prefetch = 1 : i64, scratch_operands = 2 : i64, tpu.core_type = #tpu.core_type<tc>, window_params = [{}, {pipeline_mode = #tpu.pipeline_mode<synchronous>, transform_indices = @transform_1, window_bounds = array<i64: 6, 11, 11>}]} {
    %c0 = arith.constant 0 : index
    %0 = memref.load %arg1[%c0] : memref<1xi32, #tpu.memory_space<smem>>
    %c0_i32 = arith.constant 0 : i32
    %c0_i32_0 = arith.constant 0 : i32
    %1 = tpu.memref_slice %arg2[%c0_i32, %0, %c0_i32_0] : memref<6x16x16xf32, #tpu.memory_space<any>> -> memref<6x11x16xf32, #tpu.memory_space<any>>
    tpu.enqueue_dma source(%1 : memref<6x11x16xf32, #tpu.memory_space<any>>) target(%arg4 : memref<6x11x16xf32, #tpu.memory_space<vmem>>) target_semaphore(%arg5 : memref<!tpu.dma_semaphore, #tpu.memory_space<semaphore_mem>>)
    %c0_i32_1 = arith.constant 0 : i32
    %c0_i32_2 = arith.constant 0 : i32
    %2 = tpu.memref_slice %arg2[%c0_i32_1, %0, %c0_i32_2] : memref<6x16x16xf32, #tpu.memory_space<any>> -> memref<6x11x16xf32, #tpu.memory_space<any>>
    tpu.wait_dma2 semaphore(%arg5 : memref<!tpu.dma_semaphore, #tpu.memory_space<semaphore_mem>>) src(%2 : memref<6x11x16xf32, #tpu.memory_space<any>>) dst(%arg4 : memref<6x11x16xf32, #tpu.memory_space<vmem>>)
    %c0_3 = arith.constant 0 : index
    %c0_4 = arith.constant 0 : index
    %c2 = arith.constant 2 : index
    %3 = vector.load %arg4[%c0_3, %c0_4, %c2] : memref<6x11x16xf32, #tpu.memory_space<vmem>>, vector<6x11x11xf32>
    %c0_5 = arith.constant 0 : index
    %c0_6 = arith.constant 0 : index
    %c0_7 = arith.constant 0 : index
    %4 = vector.load %arg3[%c0_5, %c0_6, %c0_7] : memref<6x11x11xf32, #tpu.memory_space<vmem>>, vector<6x11x11xf32>
    tpu.vector_store %arg3[%c0_5, %c0_6, %c0_7], %3 {strides = array<i32>} : memref<6x11x11xf32, #tpu.memory_space<vmem>>, vector<6x11x11xf32>,
    return
  }
  func.func @transform_1(%arg0: i32, %arg1: memref<1xi32, #tpu.memory_space<smem>>) -> (i32, i32, i32) {
    %c0_i32 = arith.constant 0 : i32
    %c0_i32_0 = arith.constant 0 : i32
    %c0_i32_1 = arith.constant 0 : i32
    %c0_i32_2 = arith.constant 0 : i32
    return %c0_i32, %c0_i32_0, %c0_i32_1 : i32, i32, i32
  }
}

</mosaic_0001>

<llo_original>
// kernel: tpu_custom_call.1
$region0: #{tpu_custom_call.1}
  #allocation0 [shape = 'u32[]', space=smem, size = 0x4, offset = 0x4, fixed_abs, tag = 'smem constant byte address 0x4 - core index']
  #allocation1 [shape = 'u32[72,128]{1,0:T(1,128)}', space=vmem, size = 0x9000, scoped, tag = 'internal scratch']
  #allocation2 [shape = 'f32[6,11,16]{2,1,0:T(8,128)}', space=vmem, size = 0xc000, scoped, tag = 'scratch operand']
  #allocation3 [shape = 's32[1]{0}', space=sflag, size = 0x4, scoped, tag = 'scratch operand']
  #allocation4 [shape = 's32[1]{0}', space=sflag, size = 0x4, scoped, tag = 'scoped memory for tpu_custom_call.1']
  #allocation5 [shape = 's32[1]{0:T(128)S(6)}', space=smem, size = 0x200, scoped, tag = 'prefetched SMEM operand 0']
  #allocation6 [shape = 's32[]', space=sflag, size = 0x4, offset = 0, fixed_abs, tag = 'sflag constant byte address 0x0 - dummy sync flag']
  %s0 = inlined_call_operand.<no memory space> [shape: s32[1], index: 0, kind: input, shape index: {}]
  %s1 = inlined_call_operand.hbm [shape: f32[6,16,16], index: 1, kind: input, shape index: {}]
  %s2 = inlined_call_operand.vmem [shape: f32[6,11,11], index: 2, kind: output, shape index: {}]
  %s3 = sld [smem:[#allocation0]]
  $region10: #{tpu_custom_call.1} parent=0
    _
  %s5 = ssub.s32 1, %s3
  %s6 = scalar_select 0, %s5, %s3
  %7 = sst [smem:[#allocation5]] %s0
  %s8 = sld [smem:[#allocation5]]
  %s9 = scalar_lea.hbm %s1, %s8
  %s10 = sshll.u32 %s9, 4
  %s11 = int_to_ptr.hbm [resolvable:$true] %s10
  %s12 = sshll.u32 [#allocation2], 4
  %s13 = int_to_ptr.vmem [resolvable:$true] %s12
  %17 = dma.hbm_to_vmem [thread:$0]  %s11, 1056, %s13, [#allocation3], 256, 256, 11
  %s18 = smul.u32 6, 11
  %s19 = smul.u32 %s18, 1
  %s20 = sshll.u32 %s19, 4
  %21 = dma.done [#allocation3], %s20
  %v22 = vld [vmem:[#allocation2] sm:$0xff]
  %v23 = vld [vmem:[#allocation2 + $0x8] sm:$0x7]
  %v24 = vld [vmem:[#allocation2 + $0x10] sm:$0xff]
  %v25 = vld [vmem:[#allocation2 + $0x18] sm:$0x7]
  %v26 = vld [vmem:[#allocation2 + $0x20] sm:$0xff]
  %v27 = vld [vmem:[#allocation2 + $0x28] sm:$0x7]
  %v28 = vld [vmem:[#allocation2 + $0x30] sm:$0xff]
  %v29 = vld [vmem:[#allocation2 + $0x38] sm:$0x7]
  %v30 = vld [vmem:[#allocation2 + $0x40] sm:$0xff]
  %v31 = vld [vmem:[#allocation2 + $0x48] sm:$0x7]
  %v32 = vld [vmem:[#allocation2 + $0x50] sm:$0xff]
  %v33 = vld [vmem:[#allocation2 + $0x58] sm:$0x7]
  %46 = vrot.lane.b32.xlu0 %v22, 126
  %v47 = vpop.permute.xlu0 %46
  %48 = vrot.lane.b32.xlu0 %v23, 126
  %v49 = vpop.permute.xlu0 %48
  %50 = vrot.lane.b32.xlu0 %v24, 126
  %v51 = vpop.permute.xlu0 %50
  %52 = vrot.lane.b32.xlu0 %v25, 126
  %v53 = vpop.permute.xlu0 %52
  %54 = vrot.lane.b32.xlu0 %v26, 126
  %v55 = vpop.permute.xlu0 %54
  %56 = vrot.lane.b32.xlu0 %v27, 126
  %v57 = vpop.permute.xlu0 %56
  %58 = vrot.lane.b32.xlu0 %v28, 126
  %v59 = vpop.permute.xlu0 %58
  %60 = vrot.lane.b32.xlu0 %v29, 126
  %v61 = vpop.permute.xlu0 %60
  %62 = vrot.lane.b32.xlu0 %v30, 126
  %v63 = vpop.permute.xlu0 %62
  %64 = vrot.lane.b32.xlu0 %v31, 126
  %v65 = vpop.permute.xlu0 %64
  %66 = vrot.lane.b32.xlu0 %v32, 126
  %v67 = vpop.permute.xlu0 %66
  %68 = vrot.lane.b32.xlu0 %v33, 126
  %v69 = vpop.permute.xlu0 %68
  %vm82 = vcmask 89088
  %83 = vst.msk [vmem:[%s2] sm:$0xff] %vm82, %v47
  %vm84 = vcmask 83968
  %85 = vst.msk [vmem:[%s2 + $0x8] sm:$0x7] %vm84, %v49
  %86 = vst.msk [vmem:[%s2 + $0x10] sm:$0xff] %vm82, %v51
  %87 = vst.msk [vmem:[%s2 + $0x18] sm:$0x7] %vm84, %v53
  %88 = vst.msk [vmem:[%s2 + $0x20] sm:$0xff] %vm82, %v55
  %89 = vst.msk [vmem:[%s2 + $0x28] sm:$0x7] %vm84, %v57
  %90 = vst.msk [vmem:[%s2 + $0x30] sm:$0xff] %vm82, %v59
  %91 = vst.msk [vmem:[%s2 + $0x38] sm:$0x7] %vm84, %v61
  %92 = vst.msk [vmem:[%s2 + $0x40] sm:$0xff] %vm82, %v63
  %93 = vst.msk [vmem:[%s2 + $0x48] sm:$0x7] %vm84, %v65
  %94 = vst.msk [vmem:[%s2 + $0x50] sm:$0xff] %vm82, %v67
  %95 = vst.msk [vmem:[%s2 + $0x58] sm:$0x7] %vm84, %v69
  // Predicated region
  $region2: #{tpu_custom_call.1} parent=0 // pred_check
    _
  $region3: #{tpu_custom_call.1} parent=0 // pred_check_branch
    %97 = sbr.rel (0) target = $region5
  $region4: #{tpu_custom_call.1} parent=0 // pred_region
    _
  $region5: #{tpu_custom_call.1} parent=0 // pred_fallthru
    _
  // Predicated region
  $region6: #{tpu_custom_call.1} parent=0 // pred_check
    _
  $region7: #{tpu_custom_call.1} parent=0 // pred_check_branch
    %99 = sbr.rel (0) target = $region9
  $region8: #{tpu_custom_call.1} parent=0 // pred_region
    _
  $region9: #{tpu_custom_call.1} parent=0 // pred_fallthru
    _
  %100 = vsyncmov [#allocation3]
  %s101 = vpop.sfrf %100
  %p102 = scmp.eq.s32.totalorder %s101, 0
  %p103 = pneg %p102
  %105 = shalt.err (%p103)

</llo_original>
